<compile_context>
chip_gen: v7x
topology: tpu7x:2x2x1
jax: 0.10.0
libtpu: 0.0.40
codegen_flags: <defaults>
</compile_context>

<pallas_src>
import math

import jax
import jax.numpy as jnp
from jax.experimental import pallas as pl
from jax.experimental.pallas import tpu as pltpu


# --------------------------------------------------------------------------- #
# Kernel
# --------------------------------------------------------------------------- #
def _biaffine_kernel(x_ref, u_ref, o_ref):
    """One grid step (batch b, Sy-tile j, Sx-tile i).

    x_ref: (tsx, Dx)          x tile with the bias_x ones column appended.
    u_ref: (Dx, tsy * n_out)  y-side contraction; column index = y*n_out + o,
                              i.e. already in the final torch memory order.
    o_ref: (tsx, tsy * n_out) output tile (lane-dense, written exactly once).
    """
    o_ref[...] = jnp.dot(
        x_ref[...], u_ref[...], preferred_element_type=jnp.float32
    ).astype(o_ref.dtype)


def _choose_tiles(sx, sy, dx, n_out, in_item, out_item, sx_cap, budget):
    """Pick (tsx, tsy) so the double-buffered working set fits `budget` bytes.

    Per grid step (everything double-buffered by the Pallas pipeline):
        x tile   : tsx * dx          * in_item  * 2
        u tile   : dx  * tsy * n_out * in_item  * 2
        out tile : tsx * tsy * n_out * out_item * 2
    """
    tsx = sx if sx <= sx_cap else max(8, (sx_cap // 8) * 8)

    def max_tsy(t):
        fixed = 2 * t * dx * in_item
        per = 2 * n_out * (dx * in_item + t * out_item)
        return max(0, (budget - fixed) // per)

    # If even a 128-row Sy tile does not fit, shrink the Sx tile instead.
    while max_tsy(tsx) < min(sy, 128) and tsx > 8:
        tsx = max(8, ((tsx // 2) // 8) * 8)

    m = max_tsy(tsx)
    tsy = sy if sy <= m else max(128, (m // 128) * 128)
    return tsx, tsy


# --------------------------------------------------------------------------- #
# Wrapper
# --------------------------------------------------------------------------- #
def biaffine_pallas(x, y, weight, *, bias_x=True, bias_y=True,
                    compute_dtype=None, out_dtype=None,
                    sx_tile_cap=256, vmem_tile_budget=32 * 1024 * 1024):
    """Pallas forward of Biaffine. Returns (B, Sx, Sy, n_out) in torch layout."""
    B, Sx, n_in = x.shape
    By, Sy, n_in_y = y.shape
    assert B == By and n_in_y == n_in
    n_out, Dx, Dy = weight.shape
    assert Dx == n_in + int(bias_x) and Dy == n_in + int(bias_y)

    if compute_dtype is None:
        compute_dtype = x.dtype      # pass jnp.bfloat16 for MXU peak (f32 acc)
    if out_dtype is None:
        out_dtype = x.dtype          # torch returns the input dtype

    # Fold the biases by appending ones columns (tiny next to the output).
    x_aug = (jnp.concatenate([x, jnp.ones_like(x[..., :1])], axis=-1)
             if bias_x else x)
    y_aug = (jnp.concatenate([y, jnp.ones_like(y[..., :1])], axis=-1)
             if bias_y else y)

    # Small y-side contraction, always accumulated in f32 (review item).
    # u[b, i, yy, o] = sum_j W[o, i, j] * y_aug[b, yy, j]  -> (B, Dx, Sy, n_out)
    u = jnp.einsum('byj,oij->biyo', y_aug, weight,
                   preferred_element_type=jnp.float32)

    in_item = jnp.dtype(compute_dtype).itemsize
    out_item = jnp.dtype(out_dtype).itemsize
    tsx, tsy = _choose_tiles(Sx, Sy, Dx, n_out, in_item, out_item,
                             sx_tile_cap, vmem_tile_budget)
    sx_p = pl.cdiv(Sx, tsx) * tsx
    sy_p = pl.cdiv(Sy, tsy) * tsy

    # Zero-pad awkward sequence lengths instead of falling back to full-size
    # blocks (review correctness item); the tail is cropped after the call.
    if sx_p != Sx:
        x_aug = jnp.pad(x_aug, ((0, 0), (0, sx_p - Sx), (0, 0)))
    if sy_p != Sy:
        u = jnp.pad(u, ((0, 0), (0, 0), (0, sy_p - Sy), (0, 0)))

    x_aug = x_aug.astype(compute_dtype)
    # Row-major merge (Sy, n_out) -> Sy*n_out is free; column = y*n_out + o,
    # i.e. exactly the torch (B, Sx, Sy, n_out) minor ordering.
    u = u.reshape(B, Dx, sy_p * n_out).astype(compute_dtype)

    ntx, nty = sx_p // tsx, sy_p // tsy
    ln = tsy * n_out                       # lane width of one output block

    cost = pl.CostEstimate(
        flops=int(2 * B * sx_p * sy_p * n_out * Dx),
        transcendentals=0,
        bytes_accessed=int(nty * B * sx_p * Dx * in_item      # x re-read / Sy tile
                           + B * Dx * sy_p * n_out * in_item  # u read once
                           + B * sx_p * sy_p * n_out * out_item))

    out = pl.pallas_call(
        _biaffine_kernel,
        out_shape=jax.ShapeDtypeStruct((B, sx_p, sy_p * n_out), out_dtype),
        grid_spec=pltpu.PrefetchScalarGridSpec(
            num_scalar_prefetch=0,
            # Sx-tile axis innermost: the (b, j) u tile keeps the same block
            # index across it, so it is only DMA'd once per (b, j).
            grid=(B, nty, ntx),
            in_specs=[
                pl.BlockSpec((None, tsx, Dx), lambda b, j, i: (b, i, 0)),
                pl.BlockSpec((None, Dx, ln), lambda b, j, i: (b, 0, j)),
            ],
            out_specs=pl.BlockSpec((None, tsx, ln), lambda b, j, i: (b, i, j)),
        ),
        compiler_params=pltpu.CompilerParams(
            # Every output block is written exactly once and no scratch is
            # carried across steps, so all axes may shard across TensorCores.
            dimension_semantics=("parallel", "parallel", "parallel"),
            # Leave headroom below v7x's 64 MiB physical VMEM (review item).
            vmem_limit_bytes=48 * 1024 * 1024,
        ),
        cost_estimate=cost,
    )(x_aug, u)

    out = out.reshape(B, sx_p, sy_p, n_out)   # zero-copy split of the lane dim
    if sx_p != Sx or sy_p != Sy:
        out = out[:, :Sx, :Sy, :]
    return out


def biaffine_ref(x, y, weight, bias_x=True, bias_y=True):
    """Pure-JAX reference (mirrors the PyTorch module exactly)."""
    if bias_x:
        x = jnp.concatenate([x, jnp.ones_like(x[..., :1])], axis=-1)
    if bias_y:
        y = jnp.concatenate([y, jnp.ones_like(y[..., :1])], axis=-1)
    s = jnp.einsum('bxi,oij,byj->boxy', x, weight, y)
    return jnp.transpose(s, (0, 2, 3, 1))


def biaffine(x, y, weight, *, bias_x=True, bias_y=True, compute_dtype=None,
             out_dtype=None, use_pallas=None):
    """Size-gated dispatch: tiny problems are pure pipeline overhead in a
    Pallas kernel, so let XLA's fused einsum handle them."""
    if use_pallas is None:
        use_pallas = x.shape[1] * y.shape[1] * weight.shape[0] >= 128 * 128
    if not use_pallas:
        return biaffine_ref(x, y, weight, bias_x=bias_x, bias_y=bias_y)
    return biaffine_pallas(x, y, weight, bias_x=bias_x, bias_y=bias_y,
                           compute_dtype=compute_dtype, out_dtype=out_dtype)


if __name__ == "__main__":
    # Module config (small, consistent with the forward pass).
    n_in, n_out = 32, 4
    bias_x = bias_y = True
    Dx, Dy = n_in + int(bias_x), n_in + int(bias_y)

    key = jax.random.PRNGKey(0)
    kx, ky, kw = jax.random.split(key, 3)

    # Deterministic xavier_normal_ init: std = sqrt(2 / (fan_in + fan_out)).
    std = math.sqrt(2.0 / (Dx + Dy))
    weight = std * jax.random.normal(kw, (n_out, Dx, Dy), dtype=jnp.float32)

    # 1) Tiny shape, single-block path (f32 in, f32 out).
    B, Sx, Sy = 2, 16, 16
    x = jax.random.normal(kx, (B, Sx, n_in), dtype=jnp.float32)
    y = jax.random.normal(ky, (B, Sy, n_in), dtype=jnp.float32)
    ref = biaffine_ref(x, y, weight, bias_x=bias_x, bias_y=bias_y)
    out = jax.block_until_ready(
        biaffine_pallas(x, y, weight, bias_x=bias_x, bias_y=bias_y))
    assert out.shape == (B, Sx, Sy, n_out), out.shape
    assert jnp.allclose(out, ref, atol=1e-4, rtol=1e-4), "f32 mismatch vs ref"

    # 2) Non-aligned lengths: forces Sx/Sy tiling, zero-padding and cropping.
    B2, Sx2, Sy2 = 2, 80, 200
    x2 = jax.random.normal(kx, (B2, Sx2, n_in), dtype=jnp.float32)
    y2 = jax.random.normal(ky, (B2, Sy2, n_in), dtype=jnp.float32)
    ref2 = biaffine_ref(x2, y2, weight, bias_x=bias_x, bias_y=bias_y)
    out2 = jax.block_until_ready(
        biaffine_pallas(x2, y2, weight, bias_x=bias_x, bias_y=bias_y,
                        sx_tile_cap=32, vmem_tile_budget=320_000))
    assert out2.shape == (B2, Sx2, Sy2, n_out), out2.shape
    assert jnp.allclose(out2, ref2, atol=1e-4, rtol=1e-4), "tiled mismatch"

    # 3) bf16 compute / bf16 output path (MXU peak + halved writeback).
    out_bf16 = jax.block_until_ready(
        biaffine_pallas(x, y, weight, bias_x=bias_x, bias_y=bias_y,
                        compute_dtype=jnp.bfloat16, out_dtype=jnp.bfloat16))
    assert out_bf16.shape == (B, Sx, Sy, n_out)
    assert out_bf16.dtype == jnp.bfloat16
    assert jnp.allclose(out_bf16.astype(jnp.float32), ref,
                        atol=0.5, rtol=0.05), "bf16 mismatch"

    print("KERNEL_OK")
</pallas_src>

<mosaic_0001>
module attributes {stable_mosaic.version = 11 : i64} {
  func.func @_biaffine_kernel(%arg0: i32, %arg1: i32, %arg2: i32, %arg3: memref<1x16x33xf32, #tpu.memory_space<vmem>>, %arg4: memref<1x33x64xf32, #tpu.memory_space<vmem>>, %arg5: memref<1x16x64xf32, #tpu.memory_space<vmem>>) attributes {dimension_semantics = [#tpu.dimension_semantics<parallel>, #tpu.dimension_semantics<parallel>, #tpu.dimension_semantics<parallel>], iteration_bounds = array<i64: 2, 1, 1>, scalar_prefetch = 0 : i64, scratch_operands = 0 : i64, tpu.core_type = #tpu.core_type<tc>, window_params = [{transform_indices = @transform_0, window_bounds = array<i64: 1, 16, 33>}, {transform_indices = @transform_1, window_bounds = array<i64: 1, 33, 64>}, {transform_indices = @transform_2, window_bounds = array<i64: 1, 16, 64>}]} {
    %c0 = arith.constant 0 : index
    %c0_0 = arith.constant 0 : index
    %c0_1 = arith.constant 0 : index
    %0 = vector.load %arg3[%c0, %c0_0, %c0_1] : memref<1x16x33xf32, #tpu.memory_space<vmem>>, vector<1x16x33xf32>
    %1 = vector.shape_cast %0 : vector<1x16x33xf32> to vector<16x33xf32>
    %c0_2 = arith.constant 0 : index
    %c0_3 = arith.constant 0 : index
    %c0_4 = arith.constant 0 : index
    %2 = vector.load %arg4[%c0_2, %c0_3, %c0_4] : memref<1x33x64xf32, #tpu.memory_space<vmem>>, vector<1x33x64xf32>
    %3 = vector.shape_cast %2 : vector<1x33x64xf32> to vector<33x64xf32>
    %cst = arith.constant dense<0.000000e+00> : vector<16x64xf32>
    %4 = tpu.matmul %1, %3, %cst {dimension_numbers = #tpu.dot_dimension_numbers<[1], [0], [0], [1], [0, 0, 1, 1], [], []>} : vector<16x33xf32>, vector<33x64xf32>, vector<16x64xf32> -> vector<16x64xf32>
    %c0_5 = arith.constant 0 : index
    %c0_6 = arith.constant 0 : index
    %c0_7 = arith.constant 0 : index
    %5 = vector.load %arg5[%c0_5, %c0_6, %c0_7] : memref<1x16x64xf32, #tpu.memory_space<vmem>>, vector<1x16x64xf32>
    %6 = vector.shape_cast %5 : vector<1x16x64xf32> to vector<16x64xf32>
    %7 = vector.shape_cast %4 : vector<16x64xf32> to vector<1x16x64xf32>
    tpu.vector_store %arg5[%c0_5, %c0_6, %c0_7], %7 {strides = array<i32>} : memref<1x16x64xf32, #tpu.memory_space<vmem>>, vector<1x16x64xf32>,
    return
  }
  func.func @transform_0(%arg0: i32, %arg1: i32, %arg2: i32) -> (i32, i32, i32) {
    %c0_i32 = arith.constant 0 : i32
    %c0_i32_0 = arith.constant 0 : i32
    return %arg0, %arg2, %c0_i32 : i32, i32, i32
  }
  func.func @transform_1(%arg0: i32, %arg1: i32, %arg2: i32) -> (i32, i32, i32) {
    %c0_i32 = arith.constant 0 : i32
    %c0_i32_0 = arith.constant 0 : i32
    return %arg0, %c0_i32, %arg1 : i32, i32, i32
  }
  func.func @transform_2(%arg0: i32, %arg1: i32, %arg2: i32) -> (i32, i32, i32) {
    %c0_i32 = arith.constant 0 : i32
    return %arg0, %arg2, %arg1 : i32, i32, i32
  }
}

</mosaic_0001>

<llo_original>
// kernel: tpu_custom_call.1
$region0: #{tpu_custom_call.1}
  #allocation0 [shape = 'u32[]', space=smem, size = 0x4, offset = 0x4, fixed_abs, tag = 'smem constant byte address 0x4 - core index']
  #allocation1 [shape = 'u32[144,128]{1,0:T(1,128)}', space=vmem, size = 0x12000, scoped, tag = 'internal scratch']
  %s0 = inlined_call_operand.vmem [shape: f32[2,16,33], index: 0, kind: input, shape index: {}]
  %s1 = inlined_call_operand.vmem [shape: f32[2,33,64], index: 1, kind: input, shape index: {}]
  %s2 = inlined_call_operand.hbm [shape: f32[2,16,64], index: 2, kind: output, shape index: {}]
  %s3 = sld [smem:[#allocation0]]
  $region41: #{tpu_custom_call.1} parent=0
    _
  %s5 = ssub.s32 1, %s3
  %s6 = scalar_select 0, %s5, %s3
  $region1: #{tpu_custom_call.1} parent=0
    #allocation2 [shape = 'u8[16384]{0}', space=vmem, size = 0x4000, scoped, tag = 'output window, operand 0']
    #allocation3 [shape = 's32[2]{0}', space=sflag, size = 0x8, scoped, tag = 'scoped memory for tpu_custom_call.1']
    %7 = vsyncpa [#allocation3], 0
    %s8 = scalar_lea.sflag [#allocation3], 1
    %9 = vsyncpa %s8, 0
    loop: start=0, step=1, limit=4
    $region2: #{tpu_custom_call.1} parent=1 // loop_pre_header
      _
    $region3: #{tpu_custom_call.1} parent=1 // loop_header
      %s11 = sphi 0, %s15
      %p12 = scmp.ge.s32.totalorder %s11, 4
      %s18 = sphi 0, %s37
      %s19 = sphi 0, %s33
      %s20 = sphi 0, %s29
      %s21 = sphi 0, %s18
      %s22 = sphi 0, %s19
      %s23 = sphi 0, %s20
      %s24 = sphi 0, %s21
      %s25 = sphi 0, %s22
      %s26 = sphi 0, %s23
      %s42 = sphi 0, %s44
      %s45 = sphi 0, %s42
      %s46 = sphi 0, %s45
      %s62 = sphi 0, %s46
      %s70 = sphi 0, %s72
      %s73 = sphi 0, %s70
      %s74 = sphi 0, %s73
      %s90 = sphi 0, %s74
      %s100 = sphi 0, %s102
      %s103 = sphi 0, %s100
      %s104 = sphi 0, %s103
      %s120 = sphi 0, %s104
    $region4: #{tpu_custom_call.1} parent=1 // loop_header_branch
      %14 = sbr.rel (%p12) target = $region8
    $region5: #{tpu_custom_call.1} parent=1 // loop_body
      %s16 = ssub.s32 %s11, 1
      %s17 = ssub.s32 %s11, 2
      %s27 = sadd.s32 1, %s20
      %p28 = scmp.ge.s32.totalorder %s27, 1
      %s29 = scalar_select %p28, 0, %s27
      %s30 = sadd.s32 1, %s19
      %s31 = scalar_select %p28, %s30, %s19
      %p32 = scmp.ge.s32.totalorder %s31, 1
      %s33 = scalar_select %p32, 0, %s31
      %s34 = sadd.s32 1, %s18
      %s35 = scalar_select %p32, %s34, %s18
      %p36 = scmp.ge.s32.totalorder %s35, 2
      %s37 = scalar_select %p36, 0, %s35
      %s38 = ssub.s32 %s18, %s37
      %s39 = ssub.s32 %s20, %s29
      %s40 = sor.u32 %s38, %s39
      %p41 = scmp.eq.s32.totalorder %s40, 0
      %s43 = sadd.s32 %s42, 1
      %s44 = scalar_select %p41, %s42, %s43
      %p47 = pneg %p41
      %p48 = scmp.eq.s32.totalorder %s11, 1
      %p49 = por %p47, %p48
      %p50 = scmp.ne.s32.totalorder %s42, %s45
      %p51 = scmp.eq.s32.totalorder %s11, 0
      %p52 = por %p50, %p51
      %p53 = scmp.ne.s32.totalorder %s42, %s45
      %p54 = scmp.eq.s32.totalorder %s16, 1
      %p55 = por %p53, %p54
      %p56 = scmp.ne.s32.totalorder %s45, %s46
      %p57 = scmp.eq.s32.totalorder %s16, 0
      %p58 = por %p56, %p57
      %p59 = scmp.ne.s32.totalorder %s45, %s46
      %p60 = scmp.eq.s32.totalorder %s17, 1
      %p61 = por %p59, %p60
      %p63 = scmp.ne.s32.totalorder %s46, %s62
      %p64 = scmp.eq.s32.totalorder %s17, 0
      %p65 = por %p63, %p64
      %s66 = ssub.s32 %s18, %s37
      %s67 = ssub.s32 %s19, %s33
      %s68 = sor.u32 %s66, %s67
      %p69 = scmp.eq.s32.totalorder %s68, 0
      %s71 = sadd.s32 %s70, 1
      %s72 = scalar_select %p69, %s70, %s71
      %p75 = pneg %p69
      %p76 = scmp.eq.s32.totalorder %s11, 1
      %p77 = por %p75, %p76
      %p78 = scmp.ne.s32.totalorder %s70, %s73
      %p79 = scmp.eq.s32.totalorder %s11, 0
      %p80 = por %p78, %p79
      %p81 = scmp.ne.s32.totalorder %s70, %s73
      %p82 = scmp.eq.s32.totalorder %s16, 1
      %p83 = por %p81, %p82
      %p84 = scmp.ne.s32.totalorder %s73, %s74
      %p85 = scmp.eq.s32.totalorder %s16, 0
      %p86 = por %p84, %p85
      %p87 = scmp.ne.s32.totalorder %s73, %s74
      %p88 = scmp.eq.s32.totalorder %s17, 1
      %p89 = por %p87, %p88
      %p91 = scmp.ne.s32.totalorder %s74, %s90
      %p92 = scmp.eq.s32.totalorder %s17, 0
      %p93 = por %p91, %p92
      %s94 = ssub.s32 %s18, %s37
      %s95 = ssub.s32 %s20, %s29
      %s96 = sor.u32 %s94, %s95
      %s97 = ssub.s32 %s19, %s33
      %s98 = sor.u32 %s96, %s97
      %p99 = scmp.eq.s32.totalorder %s98, 0
      %s101 = sadd.s32 %s100, 1
      %s102 = scalar_select %p99, %s100, %s101
      %p105 = pneg %p99
      %p106 = scmp.eq.s32.totalorder %s11, 1
      %p107 = por %p105, %p106
      %p108 = scmp.ne.s32.totalorder %s100, %s103
      %p109 = scmp.eq.s32.totalorder %s11, 0
      %p110 = por %p108, %p109
      %p111 = scmp.ne.s32.totalorder %s100, %s103
      %p112 = scmp.eq.s32.totalorder %s16, 1
      %p113 = por %p111, %p112
      %p114 = scmp.ne.s32.totalorder %s103, %s104
      %p115 = scmp.eq.s32.totalorder %s16, 0
      %p116 = por %p114, %p115
      %p117 = scmp.ne.s32.totalorder %s103, %s104
      %p118 = scmp.eq.s32.totalorder %s17, 1
      %p119 = por %p117, %p118
      %p121 = scmp.ne.s32.totalorder %s104, %s120
      %p122 = scmp.eq.s32.totalorder %s17, 0
      %p123 = por %p121, %p122
      %p124 = scmp.le.s32.totalorder 1, %s11
      %p125 = scmp.lt.s32.totalorder %s11, 3
      %p126 = pnand %p124, %p125
      %p127 = pneg %p126
      // Predicated region
      $region9: #{tpu_custom_call.1} parent=5 // pred_check
        _
      $region10: #{tpu_custom_call.1} parent=5 // pred_check_branch
        %129 = sbr.rel (%p126) target = $region12
      $region11: #{tpu_custom_call.1} parent=5 // pred_region
        %s130 = ssub.s32 %s11, 1
      $region12: #{tpu_custom_call.1} parent=5 // pred_fallthru
        _
      %p131 = scmp.lt.s32.totalorder %s11, 2
      // Predicated region
      $region13: #{tpu_custom_call.1} parent=5 // pred_check
        %p132 = pneg %p131
      $region14: #{tpu_custom_call.1} parent=5 // pred_check_branch
        %134 = sbr.rel (%p132) target = $region16
      $region15: #{tpu_custom_call.1} parent=5 // pred_region
        // Predicated region
        $region17: #{tpu_custom_call.1} parent=15 // pred_check
          %p135 = pneg %p52
        $region18: #{tpu_custom_call.1} parent=15 // pred_check_branch
          %137 = sbr.rel (%p135) target = $region20
        $region19: #{tpu_custom_call.1} parent=15 // pred_region
          %s138 = smul.u32 2, %s20
          %p139 = scmp.lt.s32.totalorder %s18, 1
          %s140 = scalar_select %p139, %s18, 1
          %p141 = scmp.lt.s32.totalorder %s138, 1
          %s142 = scalar_select %p141, %s138, 1
          %s143 = smul.addr %s140, 2
          %s144 = sadd.s32 %s142, %s143
          %s145 = smul.addr %s144, 8
          %s146 = scalar_lea.vmem %s0, %s145
          %s147 = smul.u32 2, %s20
        $region20: #{tpu_custom_call.1} parent=15 // pred_fallthru
          _
        // Predicated region
        $region21: #{tpu_custom_call.1} parent=15 // pred_check
          %p148 = pneg %p80
        $region22: #{tpu_custom_call.1} parent=15 // pred_check_branch
          %150 = sbr.rel (%p148) target = $region24
        $region23: #{tpu_custom_call.1} parent=15 // pred_region
          %p151 = scmp.lt.s32.totalorder %s18, 1
          %s152 = scalar_select %p151, %s18, 1
          %p153 = scmp.lt.s32.totalorder %s19, 0
          %s154 = scalar_select %p153, %s19, 0
          %s155 = smul.addr %s152, 5
          %s156 = sadd.s32 %s154, %s155
          %s157 = smul.addr %s156, 8
          %s158 = scalar_lea.vmem %s1, %s157
        $region24: #{tpu_custom_call.1} parent=15 // pred_fallthru
          _
      $region16: #{tpu_custom_call.1} parent=5 // pred_fallthru
        _
      %p159 = scmp.le.s32.totalorder 1, %s11
      %p160 = scmp.lt.s32.totalorder %s11, 3
      %p161 = pnand %p159, %p160
      %p162 = pneg %p161
      // Predicated region
      $region25: #{tpu_custom_call.1} parent=5 // pred_check
        _
      $region26: #{tpu_custom_call.1} parent=5 // pred_check_branch
        %164 = sbr.rel (%p161) target = $region28
      $region27: #{tpu_custom_call.1} parent=5 // pred_region
        %s165 = ssub.s32 %s11, 1
        %s166 = smul.u32 2, %s23
        %p167 = scmp.lt.s32.totalorder %s21, 1
        %s168 = scalar_select %p167, %s21, 1
        %p169 = scmp.lt.s32.totalorder %s166, 1
        %s170 = scalar_select %p169, %s166, 1
        %s171 = smul.addr %s168, 2
        %s172 = sadd.s32 %s170, %s171
        %s173 = smul.addr %s172, 8
        %s174 = scalar_lea.vmem %s0, %s173
        %p175 = pneg %p58
        %p176 = pneg %p55
        %p177 = scmp.lt.s32.totalorder %s21, 1
        %s178 = scalar_select %p177, %s21, 1
        %p179 = scmp.lt.s32.totalorder %s22, 0
        %s180 = scalar_select %p179, %s22, 0
        %s181 = smul.addr %s178, 5
        %s182 = sadd.s32 %s180, %s181
        %s183 = smul.addr %s182, 8
        %s184 = scalar_lea.vmem %s1, %s183
        %p185 = pneg %p86
        %p186 = pneg %p83
        %p187 = pneg %p116
        %p188 = pneg %p113
        %s189 = sand.u32 %s103, 1
        %s190 = scalar_lea.sflag [#allocation3], %s189
        %s191 = sand.u32 %s103, 1
        %s192 = smul.addr %s191, 16
        %s193 = scalar_lea.vmem [#allocation2], %s192
        %s194 = smul.u32 2, %s23
        %p195 = scmp.lt.s32.totalorder %s21, 1
        %s196 = scalar_select %p195, %s21, 1
        %p197 = scmp.lt.s32.totalorder %s194, 1
        %s198 = scalar_select %p197, %s194, 1
        %s199 = smul.addr %s196, 2
        %s200 = sadd.s32 %s198, %s199
        %s201 = smul.addr %s200, 8
        %s202 = scalar_lea.vmem %s0, %s201
        %s203 = smul.u32 2, %s23
        %p204 = scmp.lt.s32.totalorder %s21, 1
        %s205 = scalar_select %p204, %s21, 1
        %p206 = scmp.lt.s32.totalorder %s22, 0
        %s207 = scalar_select %p206, %s22, 0
        %s208 = smul.addr %s205, 5
        %s209 = sadd.s32 %s207, %s208
        %s210 = smul.addr %s209, 8
        %s211 = scalar_lea.vmem %s1, %s210
        %s212 = smul.u32 2, %s23
        %v213 = vld [vmem:[%s202] sm:$0xff]
        %v214 = vld [vmem:[%s202 + $0x8] sm:$0xff]
        %v215 = vld [vmem:[%s211] sm:$0xff]
        %v216 = vld [vmem:[%s211 + $0x8] sm:$0xff]
        %v217 = vld [vmem:[%s211 + $0x10] sm:$0xff]
        %v218 = vld [vmem:[%s211 + $0x18] sm:$0xff]
        %v219 = vld [vmem:[%s211 + $0x20] sm:$0x1]
        %vm220 = vcmask 269312
        %v222 = vsel %vm220, %v213, 0
        %v225 = vsel %vm220, %v214, 0
        %vm227 = vcmask 1040384
        %v229 = vsel %vm227, %v219, 0
        %231 = vmatprep.subr.mxu0 0.0
        %232 = vmatpush1.msra.mxu0 %v215
        %233 = vmatprep.subr.mxu0 0.0
        %234 = vmatpush1.msra.mxu0 %v216
        %235 = vmatprep.subr.mxu0 0.0
        %236 = vmatpush1.msra.mxu0 %v217
        %237 = vmatprep.subr.mxu0 0.0
        %238 = vmatpush1.msra.mxu0 %v218
        %239 = vmatprep.subr.mxu0 0.0
        %240 = vmatpush1.msra.mxu0 %v229
        %241 = vmatprep.subr.mxu0 0.0
        %242 = vmatpush1.msra.mxu0 0.0
        %243 = vmatprep.subr.mxu0 0.0
        %244 = vmatpush1.msra.mxu0 0.0
        %245 = vmatprep.subr.mxu0 0.0
        %246 = vmatpush1.msra.mxu0 0.0
        %247 = vmatprep.subr.mxu0 0.0
        %248 = vmatpush1.msra.mxu0 0.0
        %249 = vmatprep.subr.mxu0 0.0
        %250 = vmatpush1.msra.mxu0 0.0
        %251 = vmatprep.subr.mxu0 0.0
        %252 = vmatpush1.msra.mxu0 0.0
        %253 = vmatprep.subr.mxu0 0.0
        %254 = vmatpush1.msra.mxu0 0.0
        %255 = vmatprep.subr.mxu0 0.0
        %256 = vmatpush1.msra.mxu0 0.0
        %257 = vmatprep.subr.mxu0 0.0
        %258 = vmatpush1.msra.mxu0 0.0
        %259 = vmatprep.subr.mxu0 0.0
        %260 = vmatpush1.msra.mxu0 0.0
        %261 = vmatprep.subr.mxu0 0.0
        %262 = vmatpush1.msra.mxu0 0.0
        %263 = vmatprep.subr.mxu0 0.0
        %264 = vmatpush1.msra.mxu0 0.0
        %265 = vmatprep.subr.mxu0 0.0
        %266 = vmatpush1.msra.mxu0 0.0
        %267 = vmatprep.subr.mxu0 0.0
        %268 = vmatpush1.msra.mxu0 0.0
        %269 = vmatprep.subr.mxu0 0.0
        %270 = vmatpush1.msra.mxu0 0.0
        %271 = vmatprep.subr.mxu0 0.0
        %272 = vmatpush1.msra.mxu0 0.0
        %273 = vmatprep.subr.mxu0 0.0
        %274 = vmatpush1.msra.mxu0 0.0
        %275 = vmatprep.subr.mxu0 0.0
        %276 = vmatpush1.msra.mxu0 0.0
        %277 = vmatprep.subr.mxu0 0.0
        %278 = vmatpush1.msra.mxu0 0.0
        %279 = vmatprep.subr.mxu0 0.0
        %280 = vmatpush1.msra.mxu0 0.0
        %281 = vmatprep.subr.mxu0 0.0
        %282 = vmatpush1.msra.mxu0 0.0
        %283 = vmatprep.subr.mxu0 0.0
        %284 = vmatpush1.msra.mxu0 0.0
        %285 = vmatprep.subr.mxu0 0.0
        %286 = vmatpush1.msra.mxu0 0.0
        %287 = vmatprep.subr.mxu0 0.0
        %288 = vmatpush1.msra.mxu0 0.0
        %289 = vmatprep.subr.mxu0 0.0
        %290 = vmatpush1.msra.mxu0 0.0
        %291 = vmatprep.subr.mxu0 0.0
        %292 = vmatpush1.msra.mxu0 0.0
        %293 = vmatprep.subr.mxu0 0.0
        %294 = vmatpush1.msra.mxu0 0.0
        %295 = vmatprep.mubr.f32.mxu0 0.0
        %296 = vmatmul.mubr.f32.gmra.mrb[0].mxu0 %v222
        %v297 = vpop.f32.mrb[0].mxu0
        %v298 = vadd.f32 0.0, %v297
        %v299 = vpop.f32.mrb[0].mxu0
        %300 = vmatprep.mubr.f32.mxu0 0.0
        %301 = vmatmul.mubr.f32.gmra.mrb[0].mxu0 %v225
        %v302 = vpop.f32.mrb[0].mxu0
        %v303 = vadd.f32 0.0, %v302
        %v304 = vpop.f32.mrb[0].mxu0
        %305 = vdwg.mxu0
        %vm306 = vcmask 523264
        %307 = vst.msk [vmem:[%s193] sm:$0xff] %vm306, %v298
        %308 = vst.msk [vmem:[%s193 + $0x8] sm:$0xff] %vm306, %v303
        %s309 = sand.u32 %s103, 1
        %s310 = scalar_lea.sflag [#allocation3], %s309
        %s311 = sand.u32 %s103, 1
        %s312 = smul.addr %s311, 16
        %s313 = scalar_lea.vmem [#allocation2], %s312
        // Predicated region
        $region29: #{tpu_custom_call.1} parent=27 // pred_check
          %p314 = pneg %p113
        $region30: #{tpu_custom_call.1} parent=27 // pred_check_branch
          %316 = sbr.rel (%p314) target = $region32
        $region31: #{tpu_custom_call.1} parent=27 // pred_region
          %s317 = smul.u32 2, %s23
          %s319 = ssub.s32 256, 256
          %320 = vsyncadd %s310, %s319
          %s321 = sadd.s32 %s22, %s317
          %s322 = smul.addr %s21, 2
          %s323 = sadd.s32 %s321, %s322
          %s324 = smul.addr %s323, 128
          %s325 = scalar_lea.hbm %s2, %s324
          %s326 = sshll.u32 %s313, 4
          %s327 = int_to_ptr.vmem [resolvable:$true] %s326
          %332 = dma.vmem_to_hbm [thread:$0]  %s327, 256, %s325, %s310, 128, 128, 8
        $region32: #{tpu_custom_call.1} parent=27 // pred_fallthru
          _
      $region28: #{tpu_custom_call.1} parent=5 // pred_fallthru
        _
      %p333 = scmp.le.s32.totalorder 2, %s11
      // Predicated region
      $region33: #{tpu_custom_call.1} parent=5 // pred_check
        %p334 = pneg %p333
      $region34: #{tpu_custom_call.1} parent=5 // pred_check_branch
        %336 = sbr.rel (%p334) target = $region36
      $region35: #{tpu_custom_call.1} parent=5 // pred_region
        %s337 = ssub.s32 %s11, 2
        // Predicated region
        $region37: #{tpu_custom_call.1} parent=35 // pred_check
          %p338 = pneg %p119
        $region38: #{tpu_custom_call.1} parent=35 // pred_check_branch
          %340 = sbr.rel (%p338) target = $region40
        $region39: #{tpu_custom_call.1} parent=35 // pred_region
          %s341 = sand.u32 %s104, 1
          %s342 = scalar_lea.sflag [#allocation3], %s341
          %s343 = sand.u32 %s104, 1
          %s344 = smul.addr %s343, 16
          %s345 = scalar_lea.vmem [#allocation2], %s344
          %346 = dma.done %s342, 256
        $region40: #{tpu_custom_call.1} parent=35 // pred_fallthru
          _
      $region36: #{tpu_custom_call.1} parent=5 // pred_fallthru
        _
    $region6: #{tpu_custom_call.1} parent=1 // loop_footer
      %s15 = sadd.s32 1, %s11
    $region7: #{tpu_custom_call.1} parent=1 // loop_footer_branch
      %10 = sbr.rel target = $region3
    $region8: #{tpu_custom_call.1} parent=1 // loop_exit
      _
    %347 = vsyncpa [#allocation3], 1
    %s348 = scalar_lea.sflag [#allocation3], 1
    %349 = vsyncpa %s348, 1

</llo_original>
